<compile_context>
chip_gen: v5e
topology: v5e:2x2
jax: 0.10.0
libtpu: 0.0.40
codegen_flags: <defaults>
</compile_context>

<pallas_src>
import math
from functools import partial

import jax
import jax.numpy as jnp
from jax.experimental import pallas as pl
from jax.experimental.pallas import tpu as pltpu


# ---------------------------------------------------------------------------
# Fused kernel: all n_layer GRU-GCN layers in one pallas_call invocation.
# ---------------------------------------------------------------------------
def _fused_gru_gcn_kernel(a_ref, x_ref, h_ref, *rest, n_layer, hidden):
    """rest = [w_block0, b_block0, whh0, bhh0, ..., (per layer) ..., hout_ref]"""
    hout_ref = rest[-1]
    p_refs = rest[:-1]
    H = hidden

    A = a_ref[...]                 # (N, N)  normalized adjacency, VMEM resident once
    cdt = A.dtype                  # matmul input dtype (f32 or bf16)
    x = x_ref[...]                 # (N, F_in) in cdt

    for i in range(n_layer):
        w_ref, b_ref, whh_ref, bhh_ref = p_refs[4 * i: 4 * i + 4]
        h_i = h_ref[i]                         # (N, H)  static layer index
        h_f32 = h_i.astype(jnp.float32)

        # One fused aggregation matmul:  A @ [x | h]   (reassociated GCN:
        # A @ (x @ W) == (A @ x) @ W, applied block-wise).
        xh = jnp.concatenate([x, h_i], axis=1)                       # (N, F_in+H)
        Axh = jnp.dot(A, xh, preferred_element_type=jnp.float32)     # (N, F_in+H) f32

        # One block gate matmul against [[Wxz|Wxr|Wxh],[Whz|Whr|0]] + summed bias.
        g = jnp.dot(Axh.astype(cdt), w_ref[...],
                    preferred_element_type=jnp.float32) + b_ref[...]  # (N, 3H) f32

        z = jax.nn.sigmoid(g[:, 0:H])
        r = jax.nn.sigmoid(g[:, H:2 * H])

        rh = (r * h_f32).astype(cdt)
        Arh = jnp.dot(A, rh, preferred_element_type=jnp.float32)      # (N, H) f32
        h_tilde = jnp.tanh(
            g[:, 2 * H:3 * H]
            + jnp.dot(Arh.astype(cdt), whh_ref[...],
                      preferred_element_type=jnp.float32)
            + bhh_ref[...])

        h_new = z * h_f32 + (1.0 - z) * h_tilde                       # f32
        hout_ref[i] = h_new.astype(hout_ref.dtype)                    # direct 3-D write
        x = h_new.astype(cdt)                                         # layer i+1 input


def _cost_estimate(N, input_size, H, n_layer, itemsize):
    flops = 0
    transcendentals = 0
    bytes_accessed = (N * N + N * input_size + n_layer * N * H) * itemsize \
        + n_layer * N * H * 4                                   # f32 output
    for i in range(n_layer):
        f_in = input_size if i == 0 else H
        flops += 2 * N * N * (f_in + H)       # A @ [x|h]
        flops += 2 * N * (f_in + H) * 3 * H   # block gate matmul
        flops += 2 * N * N * H                # A @ (r*h)
        flops += 2 * N * H * H                # Arh @ Whh
        flops += 10 * N * H                   # gate elementwise
        transcendentals += 3 * N * H          # 2 sigmoid + 1 tanh
        bytes_accessed += ((f_in + H) * 3 * H + H * H) * itemsize + (3 * H + H) * 4
    return pl.CostEstimate(flops=flops, transcendentals=transcendentals,
                           bytes_accessed=bytes_accessed)


def fused_gru_gcn(A, inp, h, packed_params, matmul_dtype=jnp.float32):
    """Single pallas_call running all layers.  Small shapes -> grid-less,
    every array is a full VMEM-resident block."""
    N, input_size = inp.shape
    n_layer, _, H = h.shape
    cdt = matmul_dtype

    ins = [A.astype(cdt), inp.astype(cdt), h.astype(cdt)]
    for p in packed_params:
        ins += [p["w_block"].astype(cdt), p["b_block"].astype(jnp.float32),
                p["whh"].astype(cdt), p["bhh"].astype(jnp.float32)]

    vmem_spec = pl.BlockSpec(memory_space=pltpu.MemorySpace.VMEM)
    kernel = partial(_fused_gru_gcn_kernel, n_layer=n_layer, hidden=H)

    # Size the scoped VMEM limit to actual usage + headroom for intermediates,
    # clamped below v7x's 64 MiB physical VMEM.
    io_bytes = sum(int(a.size) * a.dtype.itemsize for a in ins) \
        + n_layer * N * H * 4
    vmem_limit = int(min(max(2 * io_bytes + (8 << 20), 16 << 20), 64 << 20))

    h_out = pl.pallas_call(
        kernel,
        out_shape=jax.ShapeDtypeStruct((n_layer, N, H), jnp.float32),
        in_specs=[vmem_spec] * len(ins),
        out_specs=vmem_spec,
        compiler_params=pltpu.CompilerParams(vmem_limit_bytes=vmem_limit),
        cost_estimate=_cost_estimate(N, input_size, H, n_layer,
                                     jnp.dtype(cdt).itemsize),
    )(*ins)
    return h_out


# ---------------------------------------------------------------------------
# Plain-JAX glue (loop-invariant, jitted together with the kernel).
# ---------------------------------------------------------------------------
def build_norm_adj(edge_index, num_nodes, improved=True):
    """Dense normalized adjacency with self-loops, exactly as GCNConv does."""
    E = edge_index.shape[1]
    edge_weight = jnp.ones((E,), dtype=jnp.float32)
    loop_idx = jnp.arange(num_nodes, dtype=edge_index.dtype)
    row = jnp.concatenate([edge_index[0], loop_idx])
    col = jnp.concatenate([edge_index[1], loop_idx])
    loop_w = jnp.full((num_nodes,), 2.0 if improved else 1.0, dtype=jnp.float32)
    w = jnp.concatenate([edge_weight, loop_w])

    deg = jnp.zeros((num_nodes,), jnp.float32).at[row].add(w)
    deg_inv = jnp.where(deg > 0, deg ** -0.5, 0.0)
    norm = deg_inv[row] * w * deg_inv[col]

    # out[row] += norm * x[col]  ==>  A_hat[row, col] = norm
    A = jnp.zeros((num_nodes, num_nodes), jnp.float32).at[row, col].add(norm)
    return A


def graph_gru_gcn_forward(inp, edge_index, h, packed_params,
                          matmul_dtype=jnp.float32):
    """Full module forward. Returns (out, h_out), both (n_layer, N, H)."""
    N = inp.shape[0]
    A = build_norm_adj(edge_index, N, improved=True)
    h_out = fused_gru_gcn(A, inp, h, packed_params, matmul_dtype=matmul_dtype)
    return h_out, h_out


# ---------------------------------------------------------------------------
# Parameter init (matches PyTorch glorot per-GCNConv; biases zero by default,
# optionally randomized to exercise the bias path in the test), plus packing
# into the block-matmul layout used by the kernel.
# ---------------------------------------------------------------------------
def glorot_init(key, fan_in, fan_out):
    stdv = math.sqrt(6.0 / (fan_in + fan_out))
    return jax.random.uniform(key, (fan_in, fan_out), jnp.float32, -stdv, stdv)


def init_params(key, input_size, hidden_size, n_layer, bias_key=None):
    """Raw per-gate weights/biases (the PyTorch parameterization)."""
    params = []
    H = hidden_size
    for i in range(n_layer):
        f_in = input_size if i == 0 else H
        layer = {}
        for name, fi in (("xz", f_in), ("hz", H), ("xr", f_in), ("hr", H),
                         ("xh", f_in), ("hh", H)):
            key, sub = jax.random.split(key)
            layer[name] = glorot_init(sub, fi, H)
            if bias_key is None:
                layer["b" + name] = jnp.zeros((H,), jnp.float32)
            else:
                bias_key, bsub = jax.random.split(bias_key)
                layer["b" + name] = jax.random.uniform(
                    bsub, (H,), jnp.float32, -0.1, 0.1)
        params.append(layer)
    return params


def pack_params(raw_params, hidden_size):
    """Pack raw parameters into the fused block-matmul layout.

    Single bias convention: b_block = [bxz+bhz | bxr+bhr | bxh]; bhh is added
    after the Whh matmul.  (No bias is ever counted twice.)
    """
    H = hidden_size
    packed = []
    for p in raw_params:
        wx = jnp.concatenate([p["xz"], p["xr"], p["xh"]], axis=1)        # (F_in, 3H)
        wh = jnp.concatenate([p["hz"], p["hr"],
                              jnp.zeros((H, H), jnp.float32)], axis=1)   # (H, 3H)
        w_block = jnp.concatenate([wx, wh], axis=0)                      # (F_in+H, 3H)
        b_block = jnp.concatenate([p["bxz"] + p["bhz"],
                                   p["bxr"] + p["bhr"],
                                   p["bxh"]]).reshape(1, 3 * H)
        packed.append({"w_block": w_block,
                       "b_block": b_block,
                       "whh": p["hh"],
                       "bhh": p["bhh"].reshape(1, H)})
    return packed


# ---------------------------------------------------------------------------
# Pure-JAX reference (original association, unfused weights, explicit biases).
# ---------------------------------------------------------------------------
def reference_forward(inp, edge_index, h, raw_params):
    N = inp.shape[0]
    A = build_norm_adj(edge_index, N, improved=True)

    def gcn(x, w, b):
        return A @ (x @ w) + b

    n_layer = h.shape[0]
    outs = []
    x = inp
    for i in range(n_layer):
        p = raw_params[i]
        z = jax.nn.sigmoid(gcn(x, p["xz"], p["bxz"]) + gcn(h[i], p["hz"], p["bhz"]))
        r = jax.nn.sigmoid(gcn(x, p["xr"], p["bxr"]) + gcn(h[i], p["hr"], p["bhr"]))
        ht = jnp.tanh(gcn(x, p["xh"], p["bxh"]) + gcn(r * h[i], p["hh"], p["bhh"]))
        hi = z * h[i] + (1 - z) * ht
        outs.append(hi)
        x = hi
    return jnp.stack(outs, axis=0)


if __name__ == "__main__":
    N = 32            # num graph nodes
    INPUT_SIZE = 16
    HIDDEN = 32
    N_LAYER = 2

    key = jax.random.PRNGKey(0)
    k_inp, k_h, k_param, k_bias = jax.random.split(key, 4)

    inp = jax.random.normal(k_inp, (N, INPUT_SIZE), jnp.float32)
    h0 = jax.random.normal(k_h, (N_LAYER, N, HIDDEN), jnp.float32)

    # deterministic ring graph (both directions), E = 64 edges
    src = jnp.arange(N, dtype=jnp.int32)
    dst = (src + 1) % N
    edge_index = jnp.stack([jnp.concatenate([src, dst]),
                            jnp.concatenate([dst, src])], axis=0)

    # Non-zero biases so the bias path is actually validated (the PyTorch
    # module zero-inits them; the forward formula is identical either way).
    raw_params = init_params(k_param, INPUT_SIZE, HIDDEN, N_LAYER, bias_key=k_bias)
    packed_params = pack_params(raw_params, HIDDEN)

    ref = reference_forward(inp, edge_index, h0, raw_params)

    # ---- f32 matmul-input path (default): strict tolerance ----------------
    fwd = jax.jit(graph_gru_gcn_forward)
    out, h_out = fwd(inp, edge_index, h0, packed_params)
    jax.block_until_ready(h_out)
    assert jnp.allclose(h_out, ref, atol=1e-4, rtol=1e-4), "f32 mismatch vs reference"

    # ---- bf16 matmul-input path (native MXU rate); f32 accumulation -------
    fwd_bf16 = jax.jit(partial(graph_gru_gcn_forward, matmul_dtype=jnp.bfloat16))
    _, h_out_bf16 = fwd_bf16(inp, edge_index, h0, packed_params)
    jax.block_until_ready(h_out_bf16)
    # Expected bf16 input-rounding drift only; loose bound catches structural bugs.
    assert jnp.allclose(h_out_bf16, ref, atol=5e-1, rtol=5e-1), "bf16 path diverged"

    print("KERNEL_OK")
</pallas_src>

<mosaic_0001>
module attributes {stable_mosaic.version = 11 : i64} {
  func.func @_fused_gru_gcn_kernel(%arg0: memref<32x32xf32, #tpu.memory_space<vmem>>, %arg1: memref<32x16xf32, #tpu.memory_space<vmem>>, %arg2: memref<2x32x32xf32, #tpu.memory_space<vmem>>, %arg3: memref<48x96xf32, #tpu.memory_space<vmem>>, %arg4: memref<1x96xf32, #tpu.memory_space<vmem>>, %arg5: memref<32x32xf32, #tpu.memory_space<vmem>>, %arg6: memref<1x32xf32, #tpu.memory_space<vmem>>, %arg7: memref<64x96xf32, #tpu.memory_space<vmem>>, %arg8: memref<1x96xf32, #tpu.memory_space<vmem>>, %arg9: memref<32x32xf32, #tpu.memory_space<vmem>>, %arg10: memref<1x32xf32, #tpu.memory_space<vmem>>, %arg11: memref<2x32x32xf32, #tpu.memory_space<vmem>>) attributes {dimension_semantics = [], scalar_prefetch = 0 : i64, scratch_operands = 0 : i64, tpu.core_type = #tpu.core_type<tc>} {
    %c0 = arith.constant 0 : index
    %c0_0 = arith.constant 0 : index
    %0 = vector.load %arg0[%c0, %c0_0] : memref<32x32xf32, #tpu.memory_space<vmem>>, vector<32x32xf32>
    %c0_1 = arith.constant 0 : index
    %c0_2 = arith.constant 0 : index
    %1 = vector.load %arg1[%c0_1, %c0_2] : memref<32x16xf32, #tpu.memory_space<vmem>>, vector<32x16xf32>
    %c0_3 = arith.constant 0 : index
    %c0_4 = arith.constant 0 : index
    %c0_5 = arith.constant 0 : index
    %2 = vector.load %arg2[%c0_3, %c0_4, %c0_5] : memref<2x32x32xf32, #tpu.memory_space<vmem>>, vector<1x32x32xf32>
    %3 = vector.shape_cast %2 : vector<1x32x32xf32> to vector<32x32xf32>
    %4 = tpu.concatenate %1, %3 in 1 : vector<32x16xf32>, vector<32x32xf32> -> vector<32x48xf32>
    %cst = arith.constant dense<0.000000e+00> : vector<32x48xf32>
    %5 = tpu.matmul %0, %4, %cst {dimension_numbers = #tpu.dot_dimension_numbers<[1], [0], [0], [1], [0, 0, 1, 1], [], []>} : vector<32x32xf32>, vector<32x48xf32>, vector<32x48xf32> -> vector<32x48xf32>
    %c0_6 = arith.constant 0 : index
    %c0_7 = arith.constant 0 : index
    %6 = vector.load %arg3[%c0_6, %c0_7] : memref<48x96xf32, #tpu.memory_space<vmem>>, vector<48x96xf32>
    %cst_8 = arith.constant dense<0.000000e+00> : vector<32x96xf32>
    %7 = tpu.matmul %5, %6, %cst_8 {dimension_numbers = #tpu.dot_dimension_numbers<[1], [0], [0], [1], [0, 0, 1, 1], [], []>} : vector<32x48xf32>, vector<48x96xf32>, vector<32x96xf32> -> vector<32x96xf32>
    %c0_9 = arith.constant 0 : index
    %c0_10 = arith.constant 0 : index
    %8 = vector.load %arg4[%c0_9, %c0_10] : memref<1x96xf32, #tpu.memory_space<vmem>>, vector<1x96xf32>
    %9 = vector.broadcast %8 : vector<1x96xf32> to vector<32x96xf32>
    %10 = arith.addf %7, %9 : vector<32x96xf32>
    %11 = vector.extract_strided_slice %10 {offsets = [0, 0], sizes = [32, 32], strides = [1, 1]} : vector<32x96xf32> to vector<32x32xf32>
    %12 = arith.negf %11 : vector<32x32xf32>
    %13 = math.exp %12 : vector<32x32xf32>
    %cst_11 = arith.constant 1.000000e+00 : f32
    %14 = vector.broadcast %cst_11 : f32 to vector<32x32xf32>
    %15 = arith.addf %14, %13 : vector<32x32xf32>
    %16 = arith.divf %14, %15 : vector<32x32xf32>
    %17 = vector.extract_strided_slice %10 {offsets = [0, 32], sizes = [32, 32], strides = [1, 1]} : vector<32x96xf32> to vector<32x32xf32>
    %18 = arith.negf %17 : vector<32x32xf32>
    %19 = math.exp %18 : vector<32x32xf32>
    %cst_12 = arith.constant 1.000000e+00 : f32
    %20 = vector.broadcast %cst_12 : f32 to vector<32x32xf32>
    %21 = arith.addf %20, %19 : vector<32x32xf32>
    %22 = arith.divf %20, %21 : vector<32x32xf32>
    %23 = arith.mulf %22, %3 : vector<32x32xf32>
    %cst_13 = arith.constant dense<0.000000e+00> : vector<32x32xf32>
    %24 = tpu.matmul %0, %23, %cst_13 {dimension_numbers = #tpu.dot_dimension_numbers<[1], [0], [0], [1], [0, 0, 1, 1], [], []>} : vector<32x32xf32>, vector<32x32xf32>, vector<32x32xf32> -> vector<32x32xf32>
    %25 = vector.extract_strided_slice %10 {offsets = [0, 64], sizes = [32, 32], strides = [1, 1]} : vector<32x96xf32> to vector<32x32xf32>
    %c0_14 = arith.constant 0 : index
    %c0_15 = arith.constant 0 : index
    %26 = vector.load %arg5[%c0_14, %c0_15] : memref<32x32xf32, #tpu.memory_space<vmem>>, vector<32x32xf32>
    %cst_16 = arith.constant dense<0.000000e+00> : vector<32x32xf32>
    %27 = tpu.matmul %24, %26, %cst_16 {dimension_numbers = #tpu.dot_dimension_numbers<[1], [0], [0], [1], [0, 0, 1, 1], [], []>} : vector<32x32xf32>, vector<32x32xf32>, vector<32x32xf32> -> vector<32x32xf32>
    %28 = arith.addf %25, %27 : vector<32x32xf32>
    %c0_17 = arith.constant 0 : index
    %c0_18 = arith.constant 0 : index
    %29 = vector.load %arg6[%c0_17, %c0_18] : memref<1x32xf32, #tpu.memory_space<vmem>>, vector<1x32xf32>
    %30 = vector.broadcast %29 : vector<1x32xf32> to vector<32x32xf32>
    %31 = arith.addf %28, %30 : vector<32x32xf32>
    %32 = math.tanh %31 : vector<32x32xf32>
    %33 = arith.mulf %16, %3 : vector<32x32xf32>
    %cst_19 = arith.constant 1.000000e+00 : f32
    %34 = vector.broadcast %cst_19 : f32 to vector<32x32xf32>
    %35 = arith.subf %34, %16 : vector<32x32xf32>
    %36 = arith.mulf %35, %32 : vector<32x32xf32>
    %37 = arith.addf %33, %36 : vector<32x32xf32>
    %c0_20 = arith.constant 0 : index
    %c0_21 = arith.constant 0 : index
    %c0_22 = arith.constant 0 : index
    %38 = vector.load %arg11[%c0_20, %c0_21, %c0_22] : memref<2x32x32xf32, #tpu.memory_space<vmem>>, vector<1x32x32xf32>
    %39 = vector.shape_cast %38 : vector<1x32x32xf32> to vector<32x32xf32>
    %40 = vector.shape_cast %37 : vector<32x32xf32> to vector<1x32x32xf32>
    tpu.vector_store %arg11[%c0_20, %c0_21, %c0_22], %40 {strides = array<i32>} : memref<2x32x32xf32, #tpu.memory_space<vmem>>, vector<1x32x32xf32>,
    %c1 = arith.constant 1 : index
    %c0_23 = arith.constant 0 : index
    %c0_24 = arith.constant 0 : index
    %41 = vector.load %arg2[%c1, %c0_23, %c0_24] : memref<2x32x32xf32, #tpu.memory_space<vmem>>, vector<1x32x32xf32>
    %42 = vector.shape_cast %41 : vector<1x32x32xf32> to vector<32x32xf32>
    %43 = tpu.concatenate %37, %42 in 1 : vector<32x32xf32>, vector<32x32xf32> -> vector<32x64xf32>
    %cst_25 = arith.constant dense<0.000000e+00> : vector<32x64xf32>
    %44 = tpu.matmul %0, %43, %cst_25 {dimension_numbers = #tpu.dot_dimension_numbers<[1], [0], [0], [1], [0, 0, 1, 1], [], []>} : vector<32x32xf32>, vector<32x64xf32>, vector<32x64xf32> -> vector<32x64xf32>
    %c0_26 = arith.constant 0 : index
    %c0_27 = arith.constant 0 : index
    %45 = vector.load %arg7[%c0_26, %c0_27] : memref<64x96xf32, #tpu.memory_space<vmem>>, vector<64x96xf32>
    %cst_28 = arith.constant dense<0.000000e+00> : vector<32x96xf32>
    %46 = tpu.matmul %44, %45, %cst_28 {dimension_numbers = #tpu.dot_dimension_numbers<[1], [0], [0], [1], [0, 0, 1, 1], [], []>} : vector<32x64xf32>, vector<64x96xf32>, vector<32x96xf32> -> vector<32x96xf32>
    %c0_29 = arith.constant 0 : index
    %c0_30 = arith.constant 0 : index
    %47 = vector.load %arg8[%c0_29, %c0_30] : memref<1x96xf32, #tpu.memory_space<vmem>>, vector<1x96xf32>
    %48 = vector.broadcast %47 : vector<1x96xf32> to vector<32x96xf32>
    %49 = arith.addf %46, %48 : vector<32x96xf32>
    %50 = vector.extract_strided_slice %49 {offsets = [0, 0], sizes = [32, 32], strides = [1, 1]} : vector<32x96xf32> to vector<32x32xf32>
    %51 = arith.negf %50 : vector<32x32xf32>
    %52 = math.exp %51 : vector<32x32xf32>
    %cst_31 = arith.constant 1.000000e+00 : f32
    %53 = vector.broadcast %cst_31 : f32 to vector<32x32xf32>
    %54 = arith.addf %53, %52 : vector<32x32xf32>
    %55 = arith.divf %53, %54 : vector<32x32xf32>
    %56 = vector.extract_strided_slice %49 {offsets = [0, 32], sizes = [32, 32], strides = [1, 1]} : vector<32x96xf32> to vector<32x32xf32>
    %57 = arith.negf %56 : vector<32x32xf32>
    %58 = math.exp %57 : vector<32x32xf32>
    %cst_32 = arith.constant 1.000000e+00 : f32
    %59 = vector.broadcast %cst_32 : f32 to vector<32x32xf32>
    %60 = arith.addf %59, %58 : vector<32x32xf32>
    %61 = arith.divf %59, %60 : vector<32x32xf32>
    %62 = arith.mulf %61, %42 : vector<32x32xf32>
    %cst_33 = arith.constant dense<0.000000e+00> : vector<32x32xf32>
    %63 = tpu.matmul %0, %62, %cst_33 {dimension_numbers = #tpu.dot_dimension_numbers<[1], [0], [0], [1], [0, 0, 1, 1], [], []>} : vector<32x32xf32>, vector<32x32xf32>, vector<32x32xf32> -> vector<32x32xf32>
    %64 = vector.extract_strided_slice %49 {offsets = [0, 64], sizes = [32, 32], strides = [1, 1]} : vector<32x96xf32> to vector<32x32xf32>
    %c0_34 = arith.constant 0 : index
    %c0_35 = arith.constant 0 : index
    %65 = vector.load %arg9[%c0_34, %c0_35] : memref<32x32xf32, #tpu.memory_space<vmem>>, vector<32x32xf32>
    %cst_36 = arith.constant dense<0.000000e+00> : vector<32x32xf32>
    %66 = tpu.matmul %63, %65, %cst_36 {dimension_numbers = #tpu.dot_dimension_numbers<[1], [0], [0], [1], [0, 0, 1, 1], [], []>} : vector<32x32xf32>, vector<32x32xf32>, vector<32x32xf32> -> vector<32x32xf32>
    %67 = arith.addf %64, %66 : vector<32x32xf32>
    %c0_37 = arith.constant 0 : index
    %c0_38 = arith.constant 0 : index
    %68 = vector.load %arg10[%c0_37, %c0_38] : memref<1x32xf32, #tpu.memory_space<vmem>>, vector<1x32xf32>
    %69 = vector.broadcast %68 : vector<1x32xf32> to vector<32x32xf32>
    %70 = arith.addf %67, %69 : vector<32x32xf32>
    %71 = math.tanh %70 : vector<32x32xf32>
    %72 = arith.mulf %55, %42 : vector<32x32xf32>
    %cst_39 = arith.constant 1.000000e+00 : f32
    %73 = vector.broadcast %cst_39 : f32 to vector<32x32xf32>
    %74 = arith.subf %73, %55 : vector<32x32xf32>
    %75 = arith.mulf %74, %71 : vector<32x32xf32>
    %76 = arith.addf %72, %75 : vector<32x32xf32>
    %c1_40 = arith.constant 1 : index
    %c0_41 = arith.constant 0 : index
    %c0_42 = arith.constant 0 : index
    %77 = vector.load %arg11[%c1_40, %c0_41, %c0_42] : memref<2x32x32xf32, #tpu.memory_space<vmem>>, vector<1x32x32xf32>
    %78 = vector.shape_cast %77 : vector<1x32x32xf32> to vector<32x32xf32>
    %79 = vector.shape_cast %76 : vector<32x32xf32> to vector<1x32x32xf32>
    tpu.vector_store %arg11[%c1_40, %c0_41, %c0_42], %79 {strides = array<i32>} : memref<2x32x32xf32, #tpu.memory_space<vmem>>, vector<1x32x32xf32>,
    return
  }
}

</mosaic_0001>

<llo_original>
// kernel: graph_gru_gcn_forward.1
$region0: #{graph_gru_gcn_forward.1}
  #allocation0 [shape = 'u32[]', space=smem, size = 0x4, offset = 0x4, fixed_abs, tag = 'smem constant byte address 0x4 - core index']
  #allocation1 [shape = 'u32[72,128]{1,0:T(1,128)}', space=vmem, size = 0x9000, scoped, tag = 'internal scratch']
  %s0 = inlined_call_operand.vmem [shape: f32[32,32], index: 0, kind: input, shape index: {}]
  %s1 = inlined_call_operand.vmem [shape: f32[32,16], index: 1, kind: input, shape index: {}]
  %s2 = inlined_call_operand.vmem [shape: f32[2,32,32], index: 2, kind: input, shape index: {}]
  %s3 = inlined_call_operand.vmem [shape: f32[48,96], index: 3, kind: input, shape index: {}]
  %s4 = inlined_call_operand.vmem [shape: f32[1,96], index: 4, kind: input, shape index: {}]
  %s5 = inlined_call_operand.vmem [shape: f32[32,32], index: 5, kind: input, shape index: {}]
  %s6 = inlined_call_operand.vmem [shape: f32[1,32], index: 6, kind: input, shape index: {}]
  %s7 = inlined_call_operand.vmem [shape: f32[64,96], index: 7, kind: input, shape index: {}]
  %s8 = inlined_call_operand.vmem [shape: f32[1,96], index: 8, kind: input, shape index: {}]
  %s9 = inlined_call_operand.vmem [shape: f32[32,32], index: 9, kind: input, shape index: {}]
  %s10 = inlined_call_operand.vmem [shape: f32[1,32], index: 10, kind: input, shape index: {}]
  %s11 = inlined_call_operand.vmem [shape: f32[2,32,32], index: 11, kind: output, shape index: {}]
  %s12 = sld [smem:[#allocation0]]
  $region54: #{graph_gru_gcn_forward.1} parent=0
    _
  %s14 = ssub.s32 1, %s12
  %s15 = scalar_select 0, %s14, %s12
  // Predicated region
  $region2: #{graph_gru_gcn_forward.1} parent=0 // pred_check
    _
  $region3: #{graph_gru_gcn_forward.1} parent=0 // pred_check_branch
    %17 = sbr.rel (0) target = $region5
  $region4: #{graph_gru_gcn_forward.1} parent=0 // pred_region
    _
  $region5: #{graph_gru_gcn_forward.1} parent=0 // pred_fallthru
    _
  // Predicated region
  $region6: #{graph_gru_gcn_forward.1} parent=0 // pred_check
    _
  $region7: #{graph_gru_gcn_forward.1} parent=0 // pred_check_branch
    %19 = sbr.rel (0) target = $region9
  $region8: #{graph_gru_gcn_forward.1} parent=0 // pred_region
    _
  $region9: #{graph_gru_gcn_forward.1} parent=0 // pred_fallthru
    _
  // Predicated region
  $region10: #{graph_gru_gcn_forward.1} parent=0 // pred_check
    _
  $region11: #{graph_gru_gcn_forward.1} parent=0 // pred_check_branch
    %21 = sbr.rel (0) target = $region13
  $region12: #{graph_gru_gcn_forward.1} parent=0 // pred_region
    _
  $region13: #{graph_gru_gcn_forward.1} parent=0 // pred_fallthru
    _
  // Predicated region
  $region14: #{graph_gru_gcn_forward.1} parent=0 // pred_check
    _
  $region15: #{graph_gru_gcn_forward.1} parent=0 // pred_check_branch
    %23 = sbr.rel (0) target = $region17
  $region16: #{graph_gru_gcn_forward.1} parent=0 // pred_region
    _
  $region17: #{graph_gru_gcn_forward.1} parent=0 // pred_fallthru
    _
  // Predicated region
  $region18: #{graph_gru_gcn_forward.1} parent=0 // pred_check
    _
  $region19: #{graph_gru_gcn_forward.1} parent=0 // pred_check_branch
    %25 = sbr.rel (0) target = $region21
  $region20: #{graph_gru_gcn_forward.1} parent=0 // pred_region
    _
  $region21: #{graph_gru_gcn_forward.1} parent=0 // pred_fallthru
    _
  // Predicated region
  $region22: #{graph_gru_gcn_forward.1} parent=0 // pred_check
    _
  $region23: #{graph_gru_gcn_forward.1} parent=0 // pred_check_branch
    %27 = sbr.rel (0) target = $region25
  $region24: #{graph_gru_gcn_forward.1} parent=0 // pred_region
    _
  $region25: #{graph_gru_gcn_forward.1} parent=0 // pred_fallthru
    _
  // Predicated region
  $region26: #{graph_gru_gcn_forward.1} parent=0 // pred_check
    _
  $region27: #{graph_gru_gcn_forward.1} parent=0 // pred_check_branch
    %29 = sbr.rel (0) target = $region29
  $region28: #{graph_gru_gcn_forward.1} parent=0 // pred_region
    _
  $region29: #{graph_gru_gcn_forward.1} parent=0 // pred_fallthru
    _
  // Predicated region
  $region30: #{graph_gru_gcn_forward.1} parent=0 // pred_check
    _
  $region31: #{graph_gru_gcn_forward.1} parent=0 // pred_check_branch
    %31 = sbr.rel (0) target = $region33
  $region32: #{graph_gru_gcn_forward.1} parent=0 // pred_region
    _
  $region33: #{graph_gru_gcn_forward.1} parent=0 // pred_fallthru
    _
  // Predicated region
  $region34: #{graph_gru_gcn_forward.1} parent=0 // pred_check
    _
  $region35: #{graph_gru_gcn_forward.1} parent=0 // pred_check_branch
    %33 = sbr.rel (0) target = $region37
  $region36: #{graph_gru_gcn_forward.1} parent=0 // pred_region
    _
  $region37: #{graph_gru_gcn_forward.1} parent=0 // pred_fallthru
    _
  // Predicated region
  $region38: #{graph_gru_gcn_forward.1} parent=0 // pred_check
    _
  $region39: #{graph_gru_gcn_forward.1} parent=0 // pred_check_branch
    %35 = sbr.rel (0) target = $region41
  $region40: #{graph_gru_gcn_forward.1} parent=0 // pred_region
    _
  $region41: #{graph_gru_gcn_forward.1} parent=0 // pred_fallthru
    _
  // Predicated region
  $region42: #{graph_gru_gcn_forward.1} parent=0 // pred_check
    _
  $region43: #{graph_gru_gcn_forward.1} parent=0 // pred_check_branch
    %37 = sbr.rel (0) target = $region45
  $region44: #{graph_gru_gcn_forward.1} parent=0 // pred_region
    _
  $region45: #{graph_gru_gcn_forward.1} parent=0 // pred_fallthru
    _
  %v38 = vld [vmem:[%s0] sm:$0xff]
  %v39 = vld [vmem:[%s0 + $0x8] sm:$0xff]
  %v40 = vld [vmem:[%s0 + $0x10] sm:$0xff]
  %v41 = vld [vmem:[%s0 + $0x18] sm:$0xff]
  %v42 = vld [vmem:[%s1] sm:$0xff]
  %v43 = vld [vmem:[%s1 + $0x8] sm:$0xff]
  %v44 = vld [vmem:[%s1 + $0x10] sm:$0xff]
  %v45 = vld [vmem:[%s1 + $0x18] sm:$0xff]
  %v46 = vld [vmem:[%s2] sm:$0xff]
  %v47 = vld [vmem:[%s2 + $0x8] sm:$0xff]
  %v48 = vld [vmem:[%s2 + $0x10] sm:$0xff]
  %v49 = vld [vmem:[%s2 + $0x18] sm:$0xff]
  %54 = vrot.lane.b32.xlu0 %v46, 16
  %v55 = vpop.permute.xlu0 %54
  %56 = vrot.lane.b32.xlu0 %v47, 16
  %v57 = vpop.permute.xlu0 %56
  %58 = vrot.lane.b32.xlu0 %v48, 16
  %v59 = vpop.permute.xlu0 %58
  %60 = vrot.lane.b32.xlu0 %v49, 16
  %v61 = vpop.permute.xlu0 %60
  %vm66 = vcmask 130048
  %v67 = vsel %vm66, %v42, %v55
  %v68 = vsel %vm66, %v43, %v57
  %v69 = vsel %vm66, %v44, %v59
  %v70 = vsel %vm66, %v45, %v61
  %vm71 = vcmask 261120
  %v73 = vsel %vm71, %v38, 0
  %v76 = vsel %vm71, %v39, 0
  %v79 = vsel %vm71, %v40, 0
  %v82 = vsel %vm71, %v41, 0
  %84 = vmatpush.msra.mxu0 0.0
  %85 = vmatpush.msra.mxu0 0.0
  %86 = vmatpush.msra.mxu0 0.0
  %87 = vmatpush.msra.mxu0 0.0
  %88 = vmatpush.msra.mxu0 0.0
  %89 = vmatpush.msra.mxu0 0.0
  %90 = vmatpush.msra.mxu0 0.0
  %91 = vmatpush.msra.mxu0 0.0
  %92 = vmatpush.msra.mxu0 0.0
  %93 = vmatpush.msra.mxu0 0.0
  %94 = vmatpush.msra.mxu0 0.0
  %95 = vmatpush.msra.mxu0 0.0
  %96 = vmatpush.msra.mxu0 %v70
  %97 = vmatpush.msra.mxu0 %v69
  %98 = vmatpush.msra.mxu0 %v68
  %99 = vmatpush.msra.mxu0 %v67
  %100 = vmatmul.f32.gmra.mxu0 %v73
  %v101 = vpop.f32.mrf.mxu0
  %v102 = vadd.f32 0.0, %v101
  %103 = vmatmul.f32.gmra.mxu0 %v76
  %v104 = vpop.f32.mrf.mxu0
  %v105 = vadd.f32 0.0, %v104
  %106 = vmatmul.f32.gmra.mxu0 %v79
  %v107 = vpop.f32.mrf.mxu0
  %v108 = vadd.f32 0.0, %v107
  %109 = vmatmul.f32.gmra.mxu0 %v82
  %v110 = vpop.f32.mrf.mxu0
  %v111 = vadd.f32 0.0, %v110
  %112 = vdwg.mxu0
  %v113 = vld [vmem:[%s3] sm:$0xff]
  %v114 = vld [vmem:[%s3 + $0x8] sm:$0xff]
  %v115 = vld [vmem:[%s3 + $0x10] sm:$0xff]
  %v116 = vld [vmem:[%s3 + $0x18] sm:$0xff]
  %v117 = vld [vmem:[%s3 + $0x20] sm:$0xff]
  %v118 = vld [vmem:[%s3 + $0x28] sm:$0xff]
  %v119 = vld [vmem:[%s4] sm:$0x1]
  %v121 = vperm.slane %v119, 0
  %vm123 = vcmask 392192
  %v125 = vsel %vm123, %v102, 0
  %v128 = vsel %vm123, %v105, 0
  %v131 = vsel %vm123, %v108, 0
  %v134 = vsel %vm123, %v111, 0
  %136 = vmatpush.msra.mxu0 0.0
  %137 = vmatpush.msra.mxu0 0.0
  %138 = vmatpush.msra.mxu0 0.0
  %139 = vmatpush.msra.mxu0 0.0
  %140 = vmatpush.msra.mxu0 0.0
  %141 = vmatpush.msra.mxu0 0.0
  %142 = vmatpush.msra.mxu0 0.0
  %143 = vmatpush.msra.mxu0 0.0
  %144 = vmatpush.msra.mxu0 0.0
  %145 = vmatpush.msra.mxu0 0.0
  %146 = vmatpush.msra.mxu0 %v118
  %147 = vmatpush.msra.mxu0 %v117
  %148 = vmatpush.msra.mxu0 %v116
  %149 = vmatpush.msra.mxu0 %v115
  %150 = vmatpush.msra.mxu0 %v114
  %151 = vmatpush.msra.mxu0 %v113
  %152 = vmatmul.f32.gmra.mxu0 %v125
  %v153 = vpop.f32.mrf.mxu0
  %v154 = vadd.f32 %v121, %v153
  %155 = vmatmul.f32.gmra.mxu0 %v128
  %v156 = vpop.f32.mrf.mxu0
  %v157 = vadd.f32 %v121, %v156
  %158 = vmatmul.f32.gmra.mxu0 %v131
  %v159 = vpop.f32.mrf.mxu0
  %v160 = vadd.f32 %v121, %v159
  %161 = vmatmul.f32.gmra.mxu0 %v134
  %v162 = vpop.f32.mrf.mxu0
  %v163 = vadd.f32 %v121, %v162
  %164 = vdwg.mxu0
  %v165 = vxor.u32 %v154, 2147483648
  %v166 = vxor.u32 %v157, 2147483648
  %v167 = vxor.u32 %v160, 2147483648
  %v168 = vxor.u32 %v163, 2147483648
  %v169 = vmul.f32 %v165, 1.442695
  %v170 = vpow.pop %v169
  %v171 = vmul.f32 %v166, 1.442695
  %v172 = vpow.pop %v171
  %v173 = vmul.f32 %v167, 1.442695
  %v174 = vpow.pop %v173
  %v175 = vmul.f32 %v168, 1.442695
  %v176 = vpow.pop %v175
  %v177 = vadd.f32 %v170, 1.0
  %v178 = vadd.f32 %v172, 1.0
  %v179 = vadd.f32 %v174, 1.0
  %v180 = vadd.f32 %v176, 1.0
  %v181 = vrcp.pop %v177
  %v182 = vmul.f32 %v177, %v181
  %v183 = vsub.f32 1.0, %v182
  %v184 = vmul.f32 %v181, %v183
  %v185 = vadd.f32 %v181, %v184
  %vm186 = vweird.f32 %v177
  %vm187 = vweird.f32 %v181
  %vm188 = vmor %vm186, %vm187
  %v189 = vsel %vm188, %v181, %v185
  %v190 = vand.u32 2147483647, %v177
  %vm191 = vcmp.eq.f32.partialorder %v190, 8.507059e+37
  %v192 = vand.u32 %v177, 2147483648
  %v193 = vor.u32 1.1754944e-38, %v192
  %v194 = vsel %vm191, %v193, %v189
  %v195 = vmul.f32 1.0, %v194
  %v196 = vrcp.pop %v178
  %v197 = vmul.f32 %v178, %v196
  %v198 = vsub.f32 1.0, %v197
  %v199 = vmul.f32 %v196, %v198
  %v200 = vadd.f32 %v196, %v199
  %vm201 = vweird.f32 %v178
  %vm202 = vweird.f32 %v196
  %vm203 = vmor %vm201, %vm202
  %v204 = vsel %vm203, %v196, %v200
  %v205 = vand.u32 2147483647, %v178
  %vm206 = vcmp.eq.f32.partialorder %v205, 8.507059e+37
  %v207 = vand.u32 %v178, 2147483648
  %v208 = vor.u32 1.1754944e-38, %v207
  %v209 = vsel %vm206, %v208, %v204
  %v210 = vmul.f32 1.0, %v209
  %v211 = vrcp.pop %v179
  %v212 = vmul.f32 %v179, %v211
  %v213 = vsub.f32 1.0, %v212
  %v214 = vmul.f32 %v211, %v213
  %v215 = vadd.f32 %v211, %v214
  %vm216 = vweird.f32 %v179
  %vm217 = vweird.f32 %v211
  %vm218 = vmor %vm216, %vm217
  %v219 = vsel %vm218, %v211, %v215
  %v220 = vand.u32 2147483647, %v179
  %vm221 = vcmp.eq.f32.partialorder %v220, 8.507059e+37
  %v222 = vand.u32 %v179, 2147483648
  %v223 = vor.u32 1.1754944e-38, %v222
  %v224 = vsel %vm221, %v223, %v219
  %v225 = vmul.f32 1.0, %v224
  %v226 = vrcp.pop %v180
  %v227 = vmul.f32 %v180, %v226
  %v228 = vsub.f32 1.0, %v227
  %v229 = vmul.f32 %v226, %v228
  %v230 = vadd.f32 %v226, %v229
  %vm231 = vweird.f32 %v180
  %vm232 = vweird.f32 %v226
  %vm233 = vmor %vm231, %vm232
  %v234 = vsel %vm233, %v226, %v230
  %v235 = vand.u32 2147483647, %v180
  %vm236 = vcmp.eq.f32.partialorder %v235, 8.507059e+37
  %v237 = vand.u32 %v180, 2147483648
  %v238 = vor.u32 1.1754944e-38, %v237
  %v239 = vsel %vm236, %v238, %v234
  %v240 = vmul.f32 1.0, %v239
  %241 = vrot.lane.b32.xlu0 %v46, 32
  %v242 = vpop.permute.xlu0 %241
  %243 = vrot.lane.b32.xlu0 %v47, 32
  %v244 = vpop.permute.xlu0 %243
  %245 = vrot.lane.b32.xlu0 %v48, 32
  %v246 = vpop.permute.xlu0 %245
  %247 = vrot.lane.b32.xlu0 %v49, 32
  %v248 = vpop.permute.xlu0 %247
  %v253 = vmul.f32 %v195, %v242
  %v254 = vmul.f32 %v210, %v244
  %v255 = vmul.f32 %v225, %v246
  %v256 = vmul.f32 %v240, %v248
  %261 = vrot.lane.b32.xlu0 %v253, 96
  %v262 = vpop.permute.xlu0 %261
  %263 = vrot.lane.b32.xlu0 %v254, 96
  %v264 = vpop.permute.xlu0 %263
  %265 = vrot.lane.b32.xlu0 %v255, 96
  %v266 = vpop.permute.xlu0 %265
  %267 = vrot.lane.b32.xlu0 %v256, 96
  %v268 = vpop.permute.xlu0 %267
  %273 = vmatpush.msra.mxu0 0.0
  %274 = vmatpush.msra.mxu0 0.0
  %275 = vmatpush.msra.mxu0 0.0
  %276 = vmatpush.msra.mxu0 0.0
  %277 = vmatpush.msra.mxu0 0.0
  %278 = vmatpush.msra.mxu0 0.0
  %279 = vmatpush.msra.mxu0 0.0
  %280 = vmatpush.msra.mxu0 0.0
  %281 = vmatpush.msra.mxu0 0.0
  %282 = vmatpush.msra.mxu0 0.0
  %283 = vmatpush.msra.mxu0 0.0
  %284 = vmatpush.msra.mxu0 0.0
  %285 = vmatpush.msra.mxu0 %v268
  %286 = vmatpush.msra.mxu0 %v266
  %287 = vmatpush.msra.mxu0 %v264
  %288 = vmatpush.msra.mxu0 %v262
  %289 = vmatmul.f32.gmra.mxu0 %v73
  %v290 = vpop.f32.mrf.mxu0
  %v291 = vadd.f32 0.0, %v290
  %292 = vmatmul.f32.gmra.mxu0 %v76
  %v293 = vpop.f32.mrf.mxu0
  %v294 = vadd.f32 0.0, %v293
  %295 = vmatmul.f32.gmra.mxu0 %v79
  %v296 = vpop.f32.mrf.mxu0
  %v297 = vadd.f32 0.0, %v296
  %298 = vmatmul.f32.gmra.mxu0 %v82
  %v299 = vpop.f32.mrf.mxu0
  %v300 = vadd.f32 0.0, %v299
  %301 = vdwg.mxu0
  %v302 = vld [vmem:[%s5] sm:$0xff]
  %v303 = vld [vmem:[%s5 + $0x8] sm:$0xff]
  %v304 = vld [vmem:[%s5 + $0x10] sm:$0xff]
  %v305 = vld [vmem:[%s5 + $0x18] sm:$0xff]
  %v307 = vsel %vm71, %v291, 0
  %v310 = vsel %vm71, %v294, 0
  %v313 = vsel %vm71, %v297, 0
  %v316 = vsel %vm71, %v300, 0
  %318 = vmatpush.msra.mxu0 0.0
  %319 = vmatpush.msra.mxu0 0.0
  %320 = vmatpush.msra.mxu0 0.0
  %321 = vmatpush.msra.mxu0 0.0
  %322 = vmatpush.msra.mxu0 0.0
  %323 = vmatpush.msra.mxu0 0.0
  %324 = vmatpush.msra.mxu0 0.0
  %325 = vmatpush.msra.mxu0 0.0
  %326 = vmatpush.msra.mxu0 0.0
  %327 = vmatpush.msra.mxu0 0.0
  %328 = vmatpush.msra.mxu0 0.0
  %329 = vmatpush.msra.mxu0 0.0
  %330 = vmatpush.msra.mxu0 %v305
  %331 = vmatpush.msra.mxu0 %v304
  %332 = vmatpush.msra.mxu0 %v303
  %333 = vmatpush.msra.mxu0 %v302
  %334 = vmatmul.f32.gmra.mxu0 %v307
  %v335 = vpop.f32.mrf.mxu0
  %v336 = vadd.f32 0.0, %v335
  %337 = vmatmul.f32.gmra.mxu0 %v310
  %v338 = vpop.f32.mrf.mxu0
  %v339 = vadd.f32 0.0, %v338
  %340 = vmatmul.f32.gmra.mxu0 %v313
  %v341 = vpop.f32.mrf.mxu0
  %v342 = vadd.f32 0.0, %v341
  %343 = vmatmul.f32.gmra.mxu0 %v316
  %v344 = vpop.f32.mrf.mxu0
  %v345 = vadd.f32 0.0, %v344
  %346 = vdwg.mxu0
  %351 = vrot.lane.b32.xlu0 %v336, 64
  %v352 = vpop.permute.xlu0 %351
  %353 = vrot.lane.b32.xlu0 %v339, 64
  %v354 = vpop.permute.xlu0 %353
  %355 = vrot.lane.b32.xlu0 %v342, 64
  %v356 = vpop.permute.xlu0 %355
  %357 = vrot.lane.b32.xlu0 %v345, 64
  %v358 = vpop.permute.xlu0 %357
  %v363 = vadd.f32 %v154, %v352
  %v364 = vadd.f32 %v157, %v354
  %v365 = vadd.f32 %v160, %v356
  %v366 = vadd.f32 %v163, %v358
  %v367 = vld [vmem:[%s6] sm:$0x1]
  %v369 = vperm.slane %v367, 0
  %370 = vrot.lane.b32.xlu0 %v369, 64
  %v371 = vpop.permute.xlu0 %370
  %v373 = vadd.f32 %v363, %v371
  %v374 = vadd.f32 %v364, %v371
  %v375 = vadd.f32 %v365, %v371
  %v376 = vadd.f32 %v366, %v371
  %v377 = vtanh.pop %v373
  %v378 = vtanh.pop %v374
  %v379 = vtanh.pop %v375
  %v380 = vtanh.pop %v376
  %v381 = vmul.f32 %v195, %v46
  %v382 = vmul.f32 %v210, %v47
  %v383 = vmul.f32 %v225, %v48
  %v384 = vmul.f32 %v240, %v49
  %v385 = vsub.f32 1.0, %v195
  %v386 = vsub.f32 1.0, %v210
  %v387 = vsub.f32 1.0, %v225
  %v388 = vsub.f32 1.0, %v240
  %393 = vrot.lane.b32.xlu0 %v377, 64
  %v394 = vpop.permute.xlu0 %393
  %395 = vrot.lane.b32.xlu0 %v378, 64
  %v396 = vpop.permute.xlu0 %395
  %397 = vrot.lane.b32.xlu0 %v379, 64
  %v398 = vpop.permute.xlu0 %397
  %399 = vrot.lane.b32.xlu0 %v380, 64
  %v400 = vpop.permute.xlu0 %399
  %v405 = vmul.f32 %v385, %v394
  %v406 = vmul.f32 %v386, %v396
  %v407 = vmul.f32 %v387, %v398
  %v408 = vmul.f32 %v388, %v400
  %v409 = vadd.f32 %v381, %v405
  %v410 = vadd.f32 %v382, %v406
  %v411 = vadd.f32 %v383, %v407
  %v412 = vadd.f32 %v384, %v408
  %413 = vst.msk [vmem:[%s11] sm:$0xff] %vm71, %v409
  %414 = vst.msk [vmem:[%s11 + $0x8] sm:$0xff] %vm71, %v410
  %415 = vst.msk [vmem:[%s11 + $0x10] sm:$0xff] %vm71, %v411
  %416 = vst.msk [vmem:[%s11 + $0x18] sm:$0xff] %vm71, %v412
  %s417 = scalar_lea.vmem %s2, 32
  %v418 = vld [vmem:[%s417] sm:$0xff]
  %v419 = vld [vmem:[%s417 + $0x8] sm:$0xff]
  %v420 = vld [vmem:[%s417 + $0x10] sm:$0xff]
  %v421 = vld [vmem:[%s417 + $0x18] sm:$0xff]
  %426 = vrot.lane.b32.xlu0 %v418, 32
  %v427 = vpop.permute.xlu0 %426
  %428 = vrot.lane.b32.xlu0 %v419, 32
  %v429 = vpop.permute.xlu0 %428
  %430 = vrot.lane.b32.xlu0 %v420, 32
  %v431 = vpop.permute.xlu0 %430
  %432 = vrot.lane.b32.xlu0 %v421, 32
  %v433 = vpop.permute.xlu0 %432
  %v438 = vsel %vm71, %v409, %v427
  %v439 = vsel %vm71, %v410, %v429
  %v440 = vsel %vm71, %v411, %v431
  %v441 = vsel %vm71, %v412, %v433
  %442 = vmatpush.msra.mxu0 0.0
  %443 = vmatpush.msra.mxu0 0.0
  %444 = vmatpush.msra.mxu0 0.0
  %445 = vmatpush.msra.mxu0 0.0
  %446 = vmatpush.msra.mxu0 0.0
  %447 = vmatpush.msra.mxu0 0.0
  %448 = vmatpush.msra.mxu0 0.0
  %449 = vmatpush.msra.mxu0 0.0
  %450 = vmatpush.msra.mxu0 0.0
  %451 = vmatpush.msra.mxu0 0.0
  %452 = vmatpush.msra.mxu0 0.0
  %453 = vmatpush.msra.mxu0 0.0
  %454 = vmatpush.msra.mxu0 %v441
  %455 = vmatpush.msra.mxu0 %v440
  %456 = vmatpush.msra.mxu0 %v439
  %457 = vmatpush.msra.mxu0 %v438
  %458 = vmatmul.f32.gmra.mxu0 %v73
  %v459 = vpop.f32.mrf.mxu0
  %v460 = vadd.f32 0.0, %v459
  %461 = vmatmul.f32.gmra.mxu0 %v76
  %v462 = vpop.f32.mrf.mxu0
  %v463 = vadd.f32 0.0, %v462
  %464 = vmatmul.f32.gmra.mxu0 %v79
  %v465 = vpop.f32.mrf.mxu0
  %v466 = vadd.f32 0.0, %v465
  %467 = vmatmul.f32.gmra.mxu0 %v82
  %v468 = vpop.f32.mrf.mxu0
  %v469 = vadd.f32 0.0, %v468
  %470 = vdwg.mxu0
  %v471 = vld [vmem:[%s7] sm:$0xff]
  %v472 = vld [vmem:[%s7 + $0x8] sm:$0xff]
  %v473 = vld [vmem:[%s7 + $0x10] sm:$0xff]
  %v474 = vld [vmem:[%s7 + $0x18] sm:$0xff]
  %v475 = vld [vmem:[%s7 + $0x20] sm:$0xff]
  %v476 = vld [vmem:[%s7 + $0x28] sm:$0xff]
  %v477 = vld [vmem:[%s7 + $0x30] sm:$0xff]
  %v478 = vld [vmem:[%s7 + $0x38] sm:$0xff]
  %v479 = vld [vmem:[%s8] sm:$0x1]
  %v481 = vperm.slane %v479, 0
  %vm483 = vcmask 523264
  %v485 = vsel %vm483, %v460, 0
  %v488 = vsel %vm483, %v463, 0
  %v491 = vsel %vm483, %v466, 0
  %v494 = vsel %vm483, %v469, 0
  %496 = vmatpush.msra.mxu0 0.0
  %497 = vmatpush.msra.mxu0 0.0
  %498 = vmatpush.msra.mxu0 0.0
  %499 = vmatpush.msra.mxu0 0.0
  %500 = vmatpush.msra.mxu0 0.0
  %501 = vmatpush.msra.mxu0 0.0
  %502 = vmatpush.msra.mxu0 0.0
  %503 = vmatpush.msra.mxu0 0.0
  %504 = vmatpush.msra.mxu0 %v478
  %505 = vmatpush.msra.mxu0 %v477
  %506 = vmatpush.msra.mxu0 %v476
  %507 = vmatpush.msra.mxu0 %v475
  %508 = vmatpush.msra.mxu0 %v474
  %509 = vmatpush.msra.mxu0 %v473
  %510 = vmatpush.msra.mxu0 %v472
  %511 = vmatpush.msra.mxu0 %v471
  %512 = vmatmul.f32.gmra.mxu0 %v485
  %v513 = vpop.f32.mrf.mxu0
  %v514 = vadd.f32 %v481, %v513
  %515 = vmatmul.f32.gmra.mxu0 %v488
  %v516 = vpop.f32.mrf.mxu0
  %v517 = vadd.f32 %v481, %v516
  %518 = vmatmul.f32.gmra.mxu0 %v491
  %v519 = vpop.f32.mrf.mxu0
  %v520 = vadd.f32 %v481, %v519
  %521 = vmatmul.f32.gmra.mxu0 %v494
  %v522 = vpop.f32.mrf.mxu0
  %v523 = vadd.f32 %v481, %v522
  %524 = vdwg.mxu0
  %v525 = vxor.u32 %v514, 2147483648
  %v526 = vxor.u32 %v517, 2147483648
  %v527 = vxor.u32 %v520, 2147483648
  %v528 = vxor.u32 %v523, 2147483648
  %v529 = vmul.f32 %v525, 1.442695
  %v530 = vpow.pop %v529
  %v531 = vmul.f32 %v526, 1.442695
  %v532 = vpow.pop %v531
  %v533 = vmul.f32 %v527, 1.442695
  %v534 = vpow.pop %v533
  %v535 = vmul.f32 %v528, 1.442695
  %v536 = vpow.pop %v535
  %v537 = vadd.f32 %v530, 1.0
  %v538 = vadd.f32 %v532, 1.0
  %v539 = vadd.f32 %v534, 1.0
  %v540 = vadd.f32 %v536, 1.0
  %v541 = vrcp.pop %v537
  %v542 = vmul.f32 %v537, %v541
  %v543 = vsub.f32 1.0, %v542
  %v544 = vmul.f32 %v541, %v543
  %v545 = vadd.f32 %v541, %v544
  %vm546 = vweird.f32 %v537
  %vm547 = vweird.f32 %v541
  %vm548 = vmor %vm546, %vm547
  %v549 = vsel %vm548, %v541, %v545
  %v550 = vand.u32 2147483647, %v537
  %vm551 = vcmp.eq.f32.partialorder %v550, 8.507059e+37
  %v552 = vand.u32 %v537, 2147483648
  %v553 = vor.u32 1.1754944e-38, %v552
  %v554 = vsel %vm551, %v553, %v549
  %v555 = vmul.f32 1.0, %v554
  %v556 = vrcp.pop %v538
  %v557 = vmul.f32 %v538, %v556
  %v558 = vsub.f32 1.0, %v557
  %v559 = vmul.f32 %v556, %v558
  %v560 = vadd.f32 %v556, %v559
  %vm561 = vweird.f32 %v538
  %vm562 = vweird.f32 %v556
  %vm563 = vmor %vm561, %vm562
  %v564 = vsel %vm563, %v556, %v560
  %v565 = vand.u32 2147483647, %v538
  %vm566 = vcmp.eq.f32.partialorder %v565, 8.507059e+37
  %v567 = vand.u32 %v538, 2147483648
  %v568 = vor.u32 1.1754944e-38, %v567
  %v569 = vsel %vm566, %v568, %v564
  %v570 = vmul.f32 1.0, %v569
  %v571 = vrcp.pop %v539
  %v572 = vmul.f32 %v539, %v571
  %v573 = vsub.f32 1.0, %v572
  %v574 = vmul.f32 %v571, %v573
  %v575 = vadd.f32 %v571, %v574
  %vm576 = vweird.f32 %v539
  %vm577 = vweird.f32 %v571
  %vm578 = vmor %vm576, %vm577
  %v579 = vsel %vm578, %v571, %v575
  %v580 = vand.u32 2147483647, %v539
  %vm581 = vcmp.eq.f32.partialorder %v580, 8.507059e+37
  %v582 = vand.u32 %v539, 2147483648
  %v583 = vor.u32 1.1754944e-38, %v582
  %v584 = vsel %vm581, %v583, %v579
  %v585 = vmul.f32 1.0, %v584
  %v586 = vrcp.pop %v540
  %v587 = vmul.f32 %v540, %v586
  %v588 = vsub.f32 1.0, %v587
  %v589 = vmul.f32 %v586, %v588
  %v590 = vadd.f32 %v586, %v589
  %vm591 = vweird.f32 %v540
  %vm592 = vweird.f32 %v586
  %vm593 = vmor %vm591, %vm592
  %v594 = vsel %vm593, %v586, %v590
  %v595 = vand.u32 2147483647, %v540
  %vm596 = vcmp.eq.f32.partialorder %v595, 8.507059e+37
  %v597 = vand.u32 %v540, 2147483648
  %v598 = vor.u32 1.1754944e-38, %v597
  %v599 = vsel %vm596, %v598, %v594
  %v600 = vmul.f32 1.0, %v599
  %v601 = vmul.f32 %v555, %v427
  %v602 = vmul.f32 %v570, %v429
  %v603 = vmul.f32 %v585, %v431
  %v604 = vmul.f32 %v600, %v433
  %609 = vrot.lane.b32.xlu0 %v601, 96
  %v610 = vpop.permute.xlu0 %609
  %611 = vrot.lane.b32.xlu0 %v602, 96
  %v612 = vpop.permute.xlu0 %611
  %613 = vrot.lane.b32.xlu0 %v603, 96
  %v614 = vpop.permute.xlu0 %613
  %615 = vrot.lane.b32.xlu0 %v604, 96
  %v616 = vpop.permute.xlu0 %615
  %621 = vmatpush.msra.mxu0 0.0
  %622 = vmatpush.msra.mxu0 0.0
  %623 = vmatpush.msra.mxu0 0.0
  %624 = vmatpush.msra.mxu0 0.0
  %625 = vmatpush.msra.mxu0 0.0
  %626 = vmatpush.msra.mxu0 0.0
  %627 = vmatpush.msra.mxu0 0.0
  %628 = vmatpush.msra.mxu0 0.0
  %629 = vmatpush.msra.mxu0 0.0
  %630 = vmatpush.msra.mxu0 0.0
  %631 = vmatpush.msra.mxu0 0.0
  %632 = vmatpush.msra.mxu0 0.0
  %633 = vmatpush.msra.mxu0 %v616
  %634 = vmatpush.msra.mxu0 %v614
  %635 = vmatpush.msra.mxu0 %v612
  %636 = vmatpush.msra.mxu0 %v610
  %637 = vmatmul.f32.gmra.mxu0 %v73
  %v638 = vpop.f32.mrf.mxu0
  %v639 = vadd.f32 0.0, %v638
  %640 = vmatmul.f32.gmra.mxu0 %v76
  %v641 = vpop.f32.mrf.mxu0
  %v642 = vadd.f32 0.0, %v641
  %643 = vmatmul.f32.gmra.mxu0 %v79
  %v644 = vpop.f32.mrf.mxu0
  %v645 = vadd.f32 0.0, %v644
  %646 = vmatmul.f32.gmra.mxu0 %v82
  %v647 = vpop.f32.mrf.mxu0
  %v648 = vadd.f32 0.0, %v647
  %649 = vdwg.mxu0
  %v650 = vld [vmem:[%s9] sm:$0xff]
  %v651 = vld [vmem:[%s9 + $0x8] sm:$0xff]
  %v652 = vld [vmem:[%s9 + $0x10] sm:$0xff]
  %v653 = vld [vmem:[%s9 + $0x18] sm:$0xff]
  %v655 = vsel %vm71, %v639, 0
  %v658 = vsel %vm71, %v642, 0
  %v661 = vsel %vm71, %v645, 0
  %v664 = vsel %vm71, %v648, 0
  %666 = vmatpush.msra.mxu0 0.0
  %667 = vmatpush.msra.mxu0 0.0
  %668 = vmatpush.msra.mxu0 0.0
  %669 = vmatpush.msra.mxu0 0.0
  %670 = vmatpush.msra.mxu0 0.0
  %671 = vmatpush.msra.mxu0 0.0
  %672 = vmatpush.msra.mxu0 0.0
  %673 = vmatpush.msra.mxu0 0.0
  %674 = vmatpush.msra.mxu0 0.0
  %675 = vmatpush.msra.mxu0 0.0
  %676 = vmatpush.msra.mxu0 0.0
  %677 = vmatpush.msra.mxu0 0.0
  %678 = vmatpush.msra.mxu0 %v653
  %679 = vmatpush.msra.mxu0 %v652
  %680 = vmatpush.msra.mxu0 %v651
  %681 = vmatpush.msra.mxu0 %v650
  %682 = vmatmul.f32.gmra.mxu0 %v655
  %v683 = vpop.f32.mrf.mxu0
  %v684 = vadd.f32 0.0, %v683
  %685 = vmatmul.f32.gmra.mxu0 %v658
  %v686 = vpop.f32.mrf.mxu0
  %v687 = vadd.f32 0.0, %v686
  %688 = vmatmul.f32.gmra.mxu0 %v661
  %v689 = vpop.f32.mrf.mxu0
  %v690 = vadd.f32 0.0, %v689
  %691 = vmatmul.f32.gmra.mxu0 %v664
  %v692 = vpop.f32.mrf.mxu0
  %v693 = vadd.f32 0.0, %v692
  %694 = vdwg.mxu0
  %699 = vrot.lane.b32.xlu0 %v684, 64
  %v700 = vpop.permute.xlu0 %699
  %701 = vrot.lane.b32.xlu0 %v687, 64
  %v702 = vpop.permute.xlu0 %701
  %703 = vrot.lane.b32.xlu0 %v690, 64
  %v704 = vpop.permute.xlu0 %703
  %705 = vrot.lane.b32.xlu0 %v693, 64
  %v706 = vpop.permute.xlu0 %705
  %v711 = vadd.f32 %v514, %v700
  %v712 = vadd.f32 %v517, %v702
  %v713 = vadd.f32 %v520, %v704
  %v714 = vadd.f32 %v523, %v706
  %v715 = vld [vmem:[%s10] sm:$0x1]
  %v717 = vperm.slane %v715, 0
  %718 = vrot.lane.b32.xlu0 %v717, 64
  %v719 = vpop.permute.xlu0 %718
  %v721 = vadd.f32 %v711, %v719
  %v722 = vadd.f32 %v712, %v719
  %v723 = vadd.f32 %v713, %v719
  %v724 = vadd.f32 %v714, %v719
  %v725 = vtanh.pop %v721
  %v726 = vtanh.pop %v722
  %v727 = vtanh.pop %v723
  %v728 = vtanh.pop %v724
  %v729 = vmul.f32 %v555, %v418
  %v730 = vmul.f32 %v570, %v419
  %v731 = vmul.f32 %v585, %v420
  %v732 = vmul.f32 %v600, %v421
  %v733 = vsub.f32 1.0, %v555
  %v734 = vsub.f32 1.0, %v570
  %v735 = vsub.f32 1.0, %v585
  %v736 = vsub.f32 1.0, %v600
  %741 = vrot.lane.b32.xlu0 %v725, 64
  %v742 = vpop.permute.xlu0 %741
  %743 = vrot.lane.b32.xlu0 %v726, 64
  %v744 = vpop.permute.xlu0 %743
  %745 = vrot.lane.b32.xlu0 %v727, 64
  %v746 = vpop.permute.xlu0 %745
  %747 = vrot.lane.b32.xlu0 %v728, 64
  %v748 = vpop.permute.xlu0 %747
  %v753 = vmul.f32 %v733, %v742
  %v754 = vmul.f32 %v734, %v744
  %v755 = vmul.f32 %v735, %v746
  %v756 = vmul.f32 %v736, %v748
  %v757 = vadd.f32 %v729, %v753
  %v758 = vadd.f32 %v730, %v754
  %v759 = vadd.f32 %v731, %v755
  %v760 = vadd.f32 %v732, %v756
  %s761 = scalar_lea.vmem %s11, 32
  %762 = vst.msk [vmem:[%s761] sm:$0xff] %vm71, %v757
  %763 = vst.msk [vmem:[%s761 + $0x8] sm:$0xff] %vm71, %v758
  %764 = vst.msk [vmem:[%s761 + $0x10] sm:$0xff] %vm71, %v759
  %765 = vst.msk [vmem:[%s761 + $0x18] sm:$0xff] %vm71, %v760
  // Predicated region
  $region46: #{graph_gru_gcn_forward.1} parent=0 // pred_check
    _
  $region47: #{graph_gru_gcn_forward.1} parent=0 // pred_check_branch
    %767 = sbr.rel (0) target = $region49
  $region48: #{graph_gru_gcn_forward.1} parent=0 // pred_region
    _
  $region49: #{graph_gru_gcn_forward.1} parent=0 // pred_fallthru
    _
  // Predicated region
  $region50: #{graph_gru_gcn_forward.1} parent=0 // pred_check
    _
  $region51: #{graph_gru_gcn_forward.1} parent=0 // pred_check_branch
    %769 = sbr.rel (0) target = $region53
  $region52: #{graph_gru_gcn_forward.1} parent=0 // pred_region
    _
  $region53: #{graph_gru_gcn_forward.1} parent=0 // pred_fallthru
    _

</llo_original>
